<compile_context>
chip_gen: v6e
topology: v6e:2x2x1
jax: 0.10.0
libtpu: 0.0.40
codegen_flags: <defaults>
</compile_context>

<pallas_src>
import functools

import jax
import jax.numpy as jnp
from jax.experimental import pallas as pl
from jax.experimental.pallas import tpu as pltpu


def _round_up(x, m):
    return (x + m - 1) // m * m


def _elu_f32(x):
    # ELU(alpha=1). exp argument clamped to <= 0 so the discarded branch can never
    # produce inf/NaN (also covers garbage rows in a boundary-masked last tile).
    # TODO(synk): switch to jnp.expm1 once its Mosaic lowering is confirmed everywhere.
    return jnp.where(x > 0, x, jnp.exp(jnp.minimum(x, 0.0)) - 1.0)


def _one_step_kernel(as_ref, d_ref, w1as_ref, w1d_ref, b1_ref, w2_ref, b2_ref, o_ref):
    """Fused 2-layer MLP; the input concat is folded into two bf16 matmuls.

    h = [a|s] @ W1_as + d @ W1_d + b1   (bf16 MXU, f32 accumulate)
    h = ELU(h)                          (f32 on VPU/EUP)
    o = bf16(h) @ W2 + b2               (bf16 MXU, f32 accumulate)
    """
    h = (jnp.dot(as_ref[...], w1as_ref[...], preferred_element_type=jnp.float32)
         + jnp.dot(d_ref[...], w1d_ref[...], preferred_element_type=jnp.float32)
         + b1_ref[...])                                                  # [tm, Hp] f32
    h = _elu_f32(h)
    o = jnp.dot(h.astype(jnp.bfloat16), w2_ref[...],
                preferred_element_type=jnp.float32) + b2_ref[...]        # [tm, Ep] f32
    o_ref[...] = o.astype(o_ref.dtype)


@functools.partial(jax.jit, static_argnames=("out_features", "block_rows"))
def one_step_mlp_pallas(as2d, d2d, w1as, w1d, b1, w2, b2, *, out_features, block_rows=512):
    """as2d: [B, A+S] bf16, d2d: [B, D] bf16. Weights already 128-padded (bf16) /
    biases f32. Returns [B, out_features] f32 (the Normal mean)."""
    B = as2d.shape[0]
    AS, D = as2d.shape[1], d2d.shape[1]
    Hp, Ep = w2.shape

    # Batch tile: multiple of 8 sublane rows; keep >= 2 grid steps when possible so
    # dimension_semantics=("parallel",) actually feeds both TensorCores on v7x.
    if B <= block_rows:
        tm = _round_up((B + 1) // 2, 8) if B > 8 else _round_up(B, 8)
    else:
        tm = block_rows
    tm = max(8, min(tm, _round_up(B, 8)))
    grid = pl.cdiv(B, tm)   # non-divisible last block is boundary-masked (no jnp.pad)

    # Explicit scoped-VMEM budget from the real per-step footprint (+2x headroom),
    # clamped to [32 MiB, 64 MiB] => safe on v5e/v6e (128 MiB phys) and v7x (64 MiB).
    act_bytes = 2 * tm * (AS + D) * 2                            # bf16 streams, 2 bufs
    wgt_bytes = ((AS + D) * Hp + Hp * Ep) * 2 + (Hp + Ep) * 4    # single-buffered
    out_bytes = 2 * tm * Ep * 4                                  # f32 output, 2 bufs
    scratch_bytes = tm * Hp * 4 + tm * Ep * 4                    # h / o intermediates
    vmem_limit = int(min(max(2 * (act_bytes + wgt_bytes + out_bytes + scratch_bytes)
                             + (2 << 20), 32 << 20), 64 << 20))

    cost = pl.CostEstimate(
        flops=2 * B * ((AS + D) * Hp + Hp * Ep),
        transcendentals=B * Hp,
        bytes_accessed=(B * (AS + D) * 2 + ((AS + D) * Hp + Hp * Ep) * 2
                        + (Hp + Ep) * 4 + B * Ep * 4))

    # Constant index_map weights don't need a second pipeline buffer.
    wbuf = pl.Buffered(buffer_count=1)

    out = pl.pallas_call(
        _one_step_kernel,
        out_shape=jax.ShapeDtypeStruct((B, Ep), jnp.float32),
        grid_spec=pltpu.PrefetchScalarGridSpec(
            num_scalar_prefetch=0,
            grid=(grid,),
            in_specs=[
                # Activation streams: tiled along the flattened batch axis.
                pl.BlockSpec((tm, AS), lambda i: (i, 0)),
                pl.BlockSpec((tm, D), lambda i: (i, 0)),
                # Weights/biases: VMEM-resident, single-buffered.
                pl.BlockSpec((AS, Hp), lambda i: (0, 0), pipeline_mode=wbuf),
                pl.BlockSpec((D, Hp), lambda i: (0, 0), pipeline_mode=wbuf),
                pl.BlockSpec((1, Hp), lambda i: (0, 0), pipeline_mode=wbuf),
                pl.BlockSpec((Hp, Ep), lambda i: (0, 0), pipeline_mode=wbuf),
                pl.BlockSpec((1, Ep), lambda i: (0, 0), pipeline_mode=wbuf),
            ],
            # Lane-dense output slab (Ep multiple of 128).
            out_specs=pl.BlockSpec((tm, Ep), lambda i: (i, 0)),
        ),
        compiler_params=pltpu.CompilerParams(
            dimension_semantics=("parallel",),       # shards across TCs on v7x
            vmem_limit_bytes=vmem_limit),
        cost_estimate=cost,
    )(as2d, d2d, w1as, w1d, b1, w2, b2)

    if Ep == out_features:
        return out          # no extra HBM pass when E is already lane-dense
    return out[:, :out_features]


class OneStepModelPallas:
    """JAX/Pallas port of p2e.networks.OneStepModel (num_layers=2, ELU)."""

    def __init__(self, action_size, embedded_state_size, stochastic_size,
                 deterministic_size, hidden_size=400, num_layers=2,
                 activation="ELU", key=jax.random.PRNGKey(0)):
        assert num_layers == 2, "this synthetic port implements the default 2-layer MLP"
        assert activation == "ELU"
        self.action_size = action_size
        self.embedded_state_size = embedded_state_size
        self.stochastic_size = stochastic_size
        self.deterministic_size = deterministic_size
        self.hidden_size = hidden_size

        in_size = action_size + stochastic_size + deterministic_size
        k1, k2, k3, k4 = jax.random.split(key, 4)
        # Deterministic synthetic init (kaiming-uniform-ish scale).
        s1 = (6.0 / in_size) ** 0.5
        s2 = (6.0 / hidden_size) ** 0.5
        w1 = jax.random.uniform(k1, (in_size, hidden_size), jnp.float32, -s1, s1)
        b1 = jax.random.uniform(k2, (1, hidden_size), jnp.float32, -s1, s1)
        w2 = jax.random.uniform(k3, (hidden_size, embedded_state_size), jnp.float32, -s2, s2)
        b2 = jax.random.uniform(k4, (1, embedded_state_size), jnp.float32, -s2, s2)

        # Unpadded f32 copies (used only by the pure-JAX semantic reference).
        self.w1, self.b1, self.w2, self.b2 = w1, b1, w2, b2

        # Kernel-side copies: zero-pad hidden/output lane dims to 128 multiples
        # (padded columns/rows are exactly zero -> math unchanged), split W1 so the
        # concat with `deterministic` is fused away, and cast weights to bf16 for
        # full-rate MXU. Biases stay f32 (added into the f32 accumulator).
        Hp = _round_up(hidden_size, 128)
        Ep = _round_up(embedded_state_size, 128)
        w1p = jnp.zeros((in_size, Hp), jnp.float32).at[:, :hidden_size].set(w1)
        b1p = jnp.zeros((1, Hp), jnp.float32).at[:, :hidden_size].set(b1)
        w2p = jnp.zeros((Hp, Ep), jnp.float32).at[:hidden_size, :embedded_state_size].set(w2)
        b2p = jnp.zeros((1, Ep), jnp.float32).at[:, :embedded_state_size].set(b2)
        AS = action_size + stochastic_size
        self.w1as = w1p[:AS].astype(jnp.bfloat16)     # [A+S, Hp]  (action+stochastic merged)
        self.w1d = w1p[AS:].astype(jnp.bfloat16)      # [D, Hp]
        self.b1p = b1p
        self.w2p = w2p.astype(jnp.bfloat16)
        self.b2p = b2p

    def __call__(self, action, stochastic, deterministic):
        # horizontal_forward: concat along last dim (action|stochastic merged in the
        # wrapper, deterministic fused via the split W1), flatten batch/horizon dims.
        bh = action.shape[:-1] or (1,)
        a2d = action.reshape(-1, action.shape[-1])
        s2d = stochastic.reshape(-1, stochastic.shape[-1])
        d2d = deterministic.reshape(-1, deterministic.shape[-1])
        as2d = jnp.concatenate([a2d, s2d], axis=-1).astype(jnp.bfloat16)
        d2d = d2d.astype(jnp.bfloat16)

        mean2d = one_step_mlp_pallas(
            as2d, d2d, self.w1as, self.w1d, self.b1p, self.w2p, self.b2p,
            out_features=self.embedded_state_size)
        mean = mean2d.reshape(*bh, self.embedded_state_size)
        # create_normal_dist(x, std=1, event_shape=1) -> Independent(Normal(mean, 1), 1).
        # Returned as (mean, std); std is a broadcastable scalar (no HBM write).
        std = jnp.asarray(1.0, jnp.float32)
        return mean, std


def _reference_forward_bf16(model, action, stochastic, deterministic):
    """Pure-JAX reference using the SAME bf16/padded weights as the kernel
    (validates the fused kernel math bit-for-bit up to accumulation order)."""
    bh = action.shape[:-1] or (1,)
    a2d = action.reshape(-1, action.shape[-1])
    s2d = stochastic.reshape(-1, stochastic.shape[-1])
    d2d = deterministic.reshape(-1, deterministic.shape[-1])
    as2d = jnp.concatenate([a2d, s2d], axis=-1).astype(jnp.bfloat16)
    d2d = d2d.astype(jnp.bfloat16)
    h = (jnp.dot(as2d, model.w1as, preferred_element_type=jnp.float32)
         + jnp.dot(d2d, model.w1d, preferred_element_type=jnp.float32)
         + model.b1p)
    h = jnp.where(h > 0, h, jnp.exp(jnp.minimum(h, 0.0)) - 1.0)
    o = jnp.dot(h.astype(jnp.bfloat16), model.w2p,
                preferred_element_type=jnp.float32) + model.b2p
    return o[:, :model.embedded_state_size].reshape(*bh, model.embedded_state_size)


def _reference_forward_f32(model, action, stochastic, deterministic):
    """Full-precision f32 reference of the original module semantics."""
    x = jnp.concatenate([action, stochastic, deterministic], axis=-1)
    bh = x.shape[:-1]
    x = x.reshape(-1, x.shape[-1]).astype(jnp.float32)
    h = x @ model.w1 + model.b1
    h = jnp.where(h > 0, h, jnp.exp(jnp.minimum(h, 0.0)) - 1.0)
    o = h @ model.w2 + model.b2
    return o.reshape(*bh, model.embedded_state_size)


if __name__ == "__main__":
    key = jax.random.PRNGKey(0)
    k_act, k_post, k_det, k_params = jax.random.split(key, 4)

    # Small, module-consistent shapes: batch=2, horizon=8,
    # action=4, stochastic=16, deterministic=16, hidden=32, embedded=24.
    action_size, stochastic_size, deterministic_size = 4, 16, 16
    hidden, embedded_state_size = 32, 24
    action = jax.random.normal(k_act, (2, 8, action_size), jnp.float32)
    stochastic = jax.random.normal(k_post, (2, 8, stochastic_size), jnp.float32)
    deterministic = jax.random.normal(k_det, (2, 8, deterministic_size), jnp.float32)

    model = OneStepModelPallas(action_size, embedded_state_size, stochastic_size,
                               deterministic_size, hidden_size=hidden,
                               num_layers=2, activation="ELU", key=k_params)

    mean, std = model(action, stochastic, deterministic)
    mean = jax.block_until_ready(mean)

    assert mean.shape == (2, 8, embedded_state_size)
    assert float(std) == 1.0   # std kept as a broadcastable scalar constant

    # Tight check vs a reference that mirrors the kernel's bf16/pad/split math.
    ref_bf16 = _reference_forward_bf16(model, action, stochastic, deterministic)
    assert jnp.allclose(mean, ref_bf16, atol=1e-2, rtol=1e-2)

    # Loose semantic check vs the original f32 module math (bf16-level tolerance).
    ref_f32 = _reference_forward_f32(model, action, stochastic, deterministic)
    assert jnp.allclose(mean, ref_f32, atol=2e-1, rtol=2e-1)

    print("KERNEL_OK")
</pallas_src>

<mosaic_0001>
module attributes {stable_mosaic.version = 11 : i64} {
  func.func @_one_step_kernel(%arg0: i32, %arg1: memref<8x20xbf16, #tpu.memory_space<vmem>>, %arg2: memref<8x16xbf16, #tpu.memory_space<vmem>>, %arg3: memref<20x128xbf16, #tpu.memory_space<vmem>>, %arg4: memref<16x128xbf16, #tpu.memory_space<vmem>>, %arg5: memref<1x128xf32, #tpu.memory_space<vmem>>, %arg6: memref<128x128xbf16, #tpu.memory_space<vmem>>, %arg7: memref<1x128xf32, #tpu.memory_space<vmem>>, %arg8: memref<8x128xf32, #tpu.memory_space<vmem>>) attributes {dimension_semantics = [#tpu.dimension_semantics<parallel>], iteration_bounds = array<i64: 2>, scalar_prefetch = 0 : i64, scratch_operands = 0 : i64, tpu.core_type = #tpu.core_type<tc>, window_params = [{transform_indices = @transform_0, window_bounds = array<i64: 8, 20>}, {transform_indices = @transform_1, window_bounds = array<i64: 8, 16>}, {pipeline_mode = #tpu.pipeline_mode<synchronous>, transform_indices = @transform_2, window_bounds = array<i64: 20, 128>}, {pipeline_mode = #tpu.pipeline_mode<synchronous>, transform_indices = @transform_3, window_bounds = array<i64: 16, 128>}, {pipeline_mode = #tpu.pipeline_mode<synchronous>, transform_indices = @transform_4, window_bounds = array<i64: 1, 128>}, {pipeline_mode = #tpu.pipeline_mode<synchronous>, transform_indices = @transform_5, window_bounds = array<i64: 128, 128>}, {pipeline_mode = #tpu.pipeline_mode<synchronous>, transform_indices = @transform_6, window_bounds = array<i64: 1, 128>}, {transform_indices = @transform_7, window_bounds = array<i64: 8, 128>}]} {
    %c0 = arith.constant 0 : index
    %c0_0 = arith.constant 0 : index
    %0 = vector.load %arg1[%c0, %c0_0] : memref<8x20xbf16, #tpu.memory_space<vmem>>, vector<8x20xbf16>
    %c0_1 = arith.constant 0 : index
    %c0_2 = arith.constant 0 : index
    %1 = vector.load %arg3[%c0_1, %c0_2] : memref<20x128xbf16, #tpu.memory_space<vmem>>, vector<20x128xbf16>
    %cst = arith.constant dense<0.000000e+00> : vector<8x128xf32>
    %2 = tpu.matmul %0, %1, %cst {dimension_numbers = #tpu.dot_dimension_numbers<[1], [0], [0], [1], [0, 0, 1, 1], [], []>} : vector<8x20xbf16>, vector<20x128xbf16>, vector<8x128xf32> -> vector<8x128xf32>
    %c0_3 = arith.constant 0 : index
    %c0_4 = arith.constant 0 : index
    %3 = vector.load %arg2[%c0_3, %c0_4] : memref<8x16xbf16, #tpu.memory_space<vmem>>, vector<8x16xbf16>
    %c0_5 = arith.constant 0 : index
    %c0_6 = arith.constant 0 : index
    %4 = vector.load %arg4[%c0_5, %c0_6] : memref<16x128xbf16, #tpu.memory_space<vmem>>, vector<16x128xbf16>
    %cst_7 = arith.constant dense<0.000000e+00> : vector<8x128xf32>
    %5 = tpu.matmul %3, %4, %cst_7 {dimension_numbers = #tpu.dot_dimension_numbers<[1], [0], [0], [1], [0, 0, 1, 1], [], []>} : vector<8x16xbf16>, vector<16x128xbf16>, vector<8x128xf32> -> vector<8x128xf32>
    %6 = arith.addf %2, %5 : vector<8x128xf32>
    %c0_8 = arith.constant 0 : index
    %c0_9 = arith.constant 0 : index
    %7 = vector.load %arg5[%c0_8, %c0_9] : memref<1x128xf32, #tpu.memory_space<vmem>>, vector<1x128xf32>
    %8 = vector.broadcast %7 : vector<1x128xf32> to vector<8x128xf32>
    %9 = arith.addf %6, %8 : vector<8x128xf32>
    %cst_10 = arith.constant 0.000000e+00 : f32
    %10 = vector.broadcast %cst_10 : f32 to vector<8x128xf32>
    %11 = arith.cmpf ogt, %9, %10 : vector<8x128xf32>
    %cst_11 = arith.constant 0.000000e+00 : f32
    %12 = vector.broadcast %cst_11 : f32 to vector<8x128xf32>
    %13 = arith.minimumf %9, %12 : vector<8x128xf32>
    %14 = math.exp %13 : vector<8x128xf32>
    %cst_12 = arith.constant 1.000000e+00 : f32
    %15 = vector.broadcast %cst_12 : f32 to vector<8x128xf32>
    %16 = arith.subf %14, %15 : vector<8x128xf32>
    %17 = arith.select %11, %9, %16 : vector<8x128xi1>, vector<8x128xf32>
    %18 = arith.truncf %17 : vector<8x128xf32> to vector<8x128xbf16>
    %c0_13 = arith.constant 0 : index
    %c0_14 = arith.constant 0 : index
    %19 = vector.load %arg6[%c0_13, %c0_14] : memref<128x128xbf16, #tpu.memory_space<vmem>>, vector<128x128xbf16>
    %cst_15 = arith.constant dense<0.000000e+00> : vector<8x128xf32>
    %20 = tpu.matmul %18, %19, %cst_15 {dimension_numbers = #tpu.dot_dimension_numbers<[1], [0], [0], [1], [0, 0, 1, 1], [], []>} : vector<8x128xbf16>, vector<128x128xbf16>, vector<8x128xf32> -> vector<8x128xf32>
    %c0_16 = arith.constant 0 : index
    %c0_17 = arith.constant 0 : index
    %21 = vector.load %arg7[%c0_16, %c0_17] : memref<1x128xf32, #tpu.memory_space<vmem>>, vector<1x128xf32>
    %22 = vector.broadcast %21 : vector<1x128xf32> to vector<8x128xf32>
    %23 = arith.addf %20, %22 : vector<8x128xf32>
    %c0_18 = arith.constant 0 : index
    %c0_19 = arith.constant 0 : index
    %24 = vector.load %arg8[%c0_18, %c0_19] : memref<8x128xf32, #tpu.memory_space<vmem>>, vector<8x128xf32>
    tpu.vector_store %arg8[%c0_18, %c0_19], %23 {strides = array<i32>} : memref<8x128xf32, #tpu.memory_space<vmem>>, vector<8x128xf32>,
    return
  }
  func.func @transform_0(%arg0: i32) -> (i32, i32) {
    %c0_i32 = arith.constant 0 : i32
    %c0_i32_0 = arith.constant 0 : i32
    return %arg0, %c0_i32 : i32, i32
  }
  func.func @transform_1(%arg0: i32) -> (i32, i32) {
    %c0_i32 = arith.constant 0 : i32
    %c0_i32_0 = arith.constant 0 : i32
    return %arg0, %c0_i32 : i32, i32
  }
  func.func @transform_2(%arg0: i32) -> (i32, i32) {
    %c0_i32 = arith.constant 0 : i32
    %c0_i32_0 = arith.constant 0 : i32
    %c0_i32_1 = arith.constant 0 : i32
    return %c0_i32, %c0_i32_0 : i32, i32
  }
  func.func @transform_3(%arg0: i32) -> (i32, i32) {
    %c0_i32 = arith.constant 0 : i32
    %c0_i32_0 = arith.constant 0 : i32
    %c0_i32_1 = arith.constant 0 : i32
    return %c0_i32, %c0_i32_0 : i32, i32
  }
  func.func @transform_4(%arg0: i32) -> (i32, i32) {
    %c0_i32 = arith.constant 0 : i32
    %c0_i32_0 = arith.constant 0 : i32
    %c0_i32_1 = arith.constant 0 : i32
    return %c0_i32, %c0_i32_0 : i32, i32
  }
  func.func @transform_5(%arg0: i32) -> (i32, i32) {
    %c0_i32 = arith.constant 0 : i32
    %c0_i32_0 = arith.constant 0 : i32
    %c0_i32_1 = arith.constant 0 : i32
    return %c0_i32, %c0_i32_0 : i32, i32
  }
  func.func @transform_6(%arg0: i32) -> (i32, i32) {
    %c0_i32 = arith.constant 0 : i32
    %c0_i32_0 = arith.constant 0 : i32
    %c0_i32_1 = arith.constant 0 : i32
    return %c0_i32, %c0_i32_0 : i32, i32
  }
  func.func @transform_7(%arg0: i32) -> (i32, i32) {
    %c0_i32 = arith.constant 0 : i32
    %c0_i32_0 = arith.constant 0 : i32
    return %arg0, %c0_i32 : i32, i32
  }
}

</mosaic_0001>

<llo_original>
// kernel: one_step_mlp_pallas.1
$region0: #{one_step_mlp_pallas.1}
  #allocation0 [shape = 'u32[]', space=smem, size = 0x4, offset = 0x4, fixed_abs, tag = 'smem constant byte address 0x4 - core index']
  #allocation1 [shape = 'u32[144,128]{1,0:T(1,128)}', space=vmem, size = 0x12000, scoped, tag = 'internal scratch']
  %s0 = inlined_call_operand.hbm [shape: bf16[16,20], index: 0, kind: input, shape index: {}]
  %s1 = inlined_call_operand.hbm [shape: bf16[16,16], index: 1, kind: input, shape index: {}]
  %s2 = inlined_call_operand.hbm [shape: bf16[20,128], index: 2, kind: input, shape index: {}]
  %s3 = inlined_call_operand.hbm [shape: bf16[16,128], index: 3, kind: input, shape index: {}]
  %s4 = inlined_call_operand.vmem [shape: f32[1,128], index: 4, kind: input, shape index: {}]
  %s5 = inlined_call_operand.hbm [shape: bf16[128,128], index: 5, kind: input, shape index: {}]
  %s6 = inlined_call_operand.vmem [shape: f32[1,128], index: 6, kind: input, shape index: {}]
  %s7 = inlined_call_operand.hbm [shape: f32[16,128], index: 7, kind: output, shape index: {}]
  %s8 = sld [smem:[#allocation0]]
  $region81: #{one_step_mlp_pallas.1} parent=0
    _
  %s10 = ssub.s32 1, %s8
  %s11 = scalar_select 0, %s10, %s8
  $region1: #{one_step_mlp_pallas.1} parent=0
    #allocation2 [shape = 'u8[4096]{0}', space=vmem, size = 0x1000, scoped, tag = 'input window, operand 0']
    #allocation3 [shape = 's32[2]{0}', space=sflag, size = 0x8, scoped, tag = 'scoped memory for one_step_mlp_pallas.1']
    #allocation4 [shape = 's32[2]{0}', space=sflag, size = 0x8, scoped, tag = 'scoped memory for one_step_mlp_pallas.1']
    #allocation5 [shape = 'u8[4096]{0}', space=vmem, size = 0x1000, scoped, tag = 'input window, operand 1']
    #allocation6 [shape = 's32[2]{0}', space=sflag, size = 0x8, scoped, tag = 'scoped memory for one_step_mlp_pallas.1']
    #allocation7 [shape = 'u8[6144]{0}', space=vmem, size = 0x1800, scoped, tag = 'input window, operand 2, single buffered']
    #allocation8 [shape = 'u8[4096]{0}', space=vmem, size = 0x1000, scoped, tag = 'input window, operand 3, single buffered']
    #allocation9 [shape = 's32[1]{0}', space=sflag, size = 0x4, scoped, tag = 'scoped memory for one_step_mlp_pallas.1']
    #allocation10 [shape = 'u8[32768]{0}', space=vmem, size = 0x8000, scoped, tag = 'input window, operand 5, single buffered']
    #allocation11 [shape = 'u8[8192]{0}', space=vmem, size = 0x2000, scoped, tag = 'output window, operand 0']
    %12 = vsyncpa [#allocation3], 0
    %s13 = scalar_lea.sflag [#allocation3], 1
    %14 = vsyncpa %s13, 0
    %15 = vsyncpa [#allocation6], 0
    %s16 = scalar_lea.sflag [#allocation6], 1
    %17 = vsyncpa %s16, 0
    %18 = vsyncpa [#allocation9], 0
    %19 = vsyncpa [#allocation4], 0
    %s20 = scalar_lea.sflag [#allocation4], 1
    %21 = vsyncpa %s20, 0
    loop: start=0, step=1, limit=4
    $region2: #{one_step_mlp_pallas.1} parent=1 // loop_pre_header
      _
    $region3: #{one_step_mlp_pallas.1} parent=1 // loop_header
      %s23 = sphi 0, %s27
      %p24 = scmp.ge.s32.totalorder %s23, 4
      %s33 = sphi 0, %s35
      %s36 = sphi 0, %s33
      %s37 = sphi 0, %s36
      %s53 = sphi 0, %s37
      %s59 = sphi 0, %s61
      %s62 = sphi 0, %s59
      %s63 = sphi 0, %s62
      %s79 = sphi 0, %s63
      %s83 = sphi 0, %s83
      %s85 = sphi 0, %s83
      %s86 = sphi 0, %s85
      %s100 = sphi 0, %s86
      %s104 = sphi 0, %s104
      %s106 = sphi 0, %s104
      %s107 = sphi 0, %s106
      %s121 = sphi 0, %s107
      %s125 = sphi 0, %s125
      %s127 = sphi 0, %s125
      %s128 = sphi 0, %s127
      %s142 = sphi 0, %s128
      %s146 = sphi 0, %s146
      %s148 = sphi 0, %s146
      %s149 = sphi 0, %s148
      %s163 = sphi 0, %s149
      %s167 = sphi 0, %s167
      %s169 = sphi 0, %s167
      %s170 = sphi 0, %s169
      %s184 = sphi 0, %s170
      %s190 = sphi 0, %s192
      %s193 = sphi 0, %s190
      %s194 = sphi 0, %s193
      %s210 = sphi 0, %s194
    $region4: #{one_step_mlp_pallas.1} parent=1 // loop_header_branch
      %26 = sbr.rel (%p24) target = $region8
    $region5: #{one_step_mlp_pallas.1} parent=1 // loop_body
      %s28 = ssub.s32 %s23, 1
      %s29 = ssub.s32 %s23, 2
      %s30 = sadd.s32 %s23, 1
      %s31 = ssub.s32 %s23, %s30
      %p32 = scmp.eq.s32.totalorder %s31, 0
      %s34 = sadd.s32 %s33, 1
      %s35 = scalar_select %p32, %s33, %s34
      %p38 = pneg %p32
      %p39 = scmp.eq.s32.totalorder %s23, 1
      %p40 = por %p38, %p39
      %p41 = scmp.ne.s32.totalorder %s33, %s36
      %p42 = scmp.eq.s32.totalorder %s23, 0
      %p43 = por %p41, %p42
      %p44 = scmp.ne.s32.totalorder %s33, %s36
      %p45 = scmp.eq.s32.totalorder %s28, 1
      %p46 = por %p44, %p45
      %p47 = scmp.ne.s32.totalorder %s36, %s37
      %p48 = scmp.eq.s32.totalorder %s28, 0
      %p49 = por %p47, %p48
      %p50 = scmp.ne.s32.totalorder %s36, %s37
      %p51 = scmp.eq.s32.totalorder %s29, 1
      %p52 = por %p50, %p51
      %p54 = scmp.ne.s32.totalorder %s37, %s53
      %p55 = scmp.eq.s32.totalorder %s29, 0
      %p56 = por %p54, %p55
      %s57 = ssub.s32 %s23, %s30
      %p58 = scmp.eq.s32.totalorder %s57, 0
      %s60 = sadd.s32 %s59, 1
      %s61 = scalar_select %p58, %s59, %s60
      %p64 = pneg %p58
      %p65 = scmp.eq.s32.totalorder %s23, 1
      %p66 = por %p64, %p65
      %p67 = scmp.ne.s32.totalorder %s59, %s62
      %p68 = scmp.eq.s32.totalorder %s23, 0
      %p69 = por %p67, %p68
      %p70 = scmp.ne.s32.totalorder %s59, %s62
      %p71 = scmp.eq.s32.totalorder %s28, 1
      %p72 = por %p70, %p71
      %p73 = scmp.ne.s32.totalorder %s62, %s63
      %p74 = scmp.eq.s32.totalorder %s28, 0
      %p75 = por %p73, %p74
      %p76 = scmp.ne.s32.totalorder %s62, %s63
      %p77 = scmp.eq.s32.totalorder %s29, 1
      %p78 = por %p76, %p77
      %p80 = scmp.ne.s32.totalorder %s63, %s79
      %p81 = scmp.eq.s32.totalorder %s29, 0
      %p82 = por %p80, %p81
      %s84 = sadd.s32 %s83, 1
      %p87 = scmp.eq.s32.totalorder %s23, 1
      %p88 = scmp.ne.s32.totalorder %s83, %s85
      %p89 = scmp.eq.s32.totalorder %s23, 0
      %p90 = por %p88, %p89
      %p91 = scmp.ne.s32.totalorder %s83, %s85
      %p92 = scmp.eq.s32.totalorder %s28, 1
      %p93 = por %p91, %p92
      %p94 = scmp.ne.s32.totalorder %s85, %s86
      %p95 = scmp.eq.s32.totalorder %s28, 0
      %p96 = por %p94, %p95
      %p97 = scmp.ne.s32.totalorder %s85, %s86
      %p98 = scmp.eq.s32.totalorder %s29, 1
      %p99 = por %p97, %p98
      %p101 = scmp.ne.s32.totalorder %s86, %s100
      %p102 = scmp.eq.s32.totalorder %s29, 0
      %p103 = por %p101, %p102
      %s105 = sadd.s32 %s104, 1
      %p108 = scmp.eq.s32.totalorder %s23, 1
      %p109 = scmp.ne.s32.totalorder %s104, %s106
      %p110 = scmp.eq.s32.totalorder %s23, 0
      %p111 = por %p109, %p110
      %p112 = scmp.ne.s32.totalorder %s104, %s106
      %p113 = scmp.eq.s32.totalorder %s28, 1
      %p114 = por %p112, %p113
      %p115 = scmp.ne.s32.totalorder %s106, %s107
      %p116 = scmp.eq.s32.totalorder %s28, 0
      %p117 = por %p115, %p116
      %p118 = scmp.ne.s32.totalorder %s106, %s107
      %p119 = scmp.eq.s32.totalorder %s29, 1
      %p120 = por %p118, %p119
      %p122 = scmp.ne.s32.totalorder %s107, %s121
      %p123 = scmp.eq.s32.totalorder %s29, 0
      %p124 = por %p122, %p123
      %s126 = sadd.s32 %s125, 1
      %p129 = scmp.eq.s32.totalorder %s23, 1
      %p130 = scmp.ne.s32.totalorder %s125, %s127
      %p131 = scmp.eq.s32.totalorder %s23, 0
      %p132 = por %p130, %p131
      %p133 = scmp.ne.s32.totalorder %s125, %s127
      %p134 = scmp.eq.s32.totalorder %s28, 1
      %p135 = por %p133, %p134
      %p136 = scmp.ne.s32.totalorder %s127, %s128
      %p137 = scmp.eq.s32.totalorder %s28, 0
      %p138 = por %p136, %p137
      %p139 = scmp.ne.s32.totalorder %s127, %s128
      %p140 = scmp.eq.s32.totalorder %s29, 1
      %p141 = por %p139, %p140
      %p143 = scmp.ne.s32.totalorder %s128, %s142
      %p144 = scmp.eq.s32.totalorder %s29, 0
      %p145 = por %p143, %p144
      %s147 = sadd.s32 %s146, 1
      %p150 = scmp.eq.s32.totalorder %s23, 1
      %p151 = scmp.ne.s32.totalorder %s146, %s148
      %p152 = scmp.eq.s32.totalorder %s23, 0
      %p153 = por %p151, %p152
      %p154 = scmp.ne.s32.totalorder %s146, %s148
      %p155 = scmp.eq.s32.totalorder %s28, 1
      %p156 = por %p154, %p155
      %p157 = scmp.ne.s32.totalorder %s148, %s149
      %p158 = scmp.eq.s32.totalorder %s28, 0
      %p159 = por %p157, %p158
      %p160 = scmp.ne.s32.totalorder %s148, %s149
      %p161 = scmp.eq.s32.totalorder %s29, 1
      %p162 = por %p160, %p161
      %p164 = scmp.ne.s32.totalorder %s149, %s163
      %p165 = scmp.eq.s32.totalorder %s29, 0
      %p166 = por %p164, %p165
      %s168 = sadd.s32 %s167, 1
      %p171 = scmp.eq.s32.totalorder %s23, 1
      %p172 = scmp.ne.s32.totalorder %s167, %s169
      %p173 = scmp.eq.s32.totalorder %s23, 0
      %p174 = por %p172, %p173
      %p175 = scmp.ne.s32.totalorder %s167, %s169
      %p176 = scmp.eq.s32.totalorder %s28, 1
      %p177 = por %p175, %p176
      %p178 = scmp.ne.s32.totalorder %s169, %s170
      %p179 = scmp.eq.s32.totalorder %s28, 0
      %p180 = por %p178, %p179
      %p181 = scmp.ne.s32.totalorder %s169, %s170
      %p182 = scmp.eq.s32.totalorder %s29, 1
      %p183 = por %p181, %p182
      %p185 = scmp.ne.s32.totalorder %s170, %s184
      %p186 = scmp.eq.s32.totalorder %s29, 0
      %p187 = por %p185, %p186
      %s188 = ssub.s32 %s23, %s30
      %p189 = scmp.eq.s32.totalorder %s188, 0
      %s191 = sadd.s32 %s190, 1
      %s192 = scalar_select %p189, %s190, %s191
      %p195 = pneg %p189
      %p196 = scmp.eq.s32.totalorder %s23, 1
      %p197 = por %p195, %p196
      %p198 = scmp.ne.s32.totalorder %s190, %s193
      %p199 = scmp.eq.s32.totalorder %s23, 0
      %p200 = por %p198, %p199
      %p201 = scmp.ne.s32.totalorder %s190, %s193
      %p202 = scmp.eq.s32.totalorder %s28, 1
      %p203 = por %p201, %p202
      %p204 = scmp.ne.s32.totalorder %s193, %s194
      %p205 = scmp.eq.s32.totalorder %s28, 0
      %p206 = por %p204, %p205
      %p207 = scmp.ne.s32.totalorder %s193, %s194
      %p208 = scmp.eq.s32.totalorder %s29, 1
      %p209 = por %p207, %p208
      %p211 = scmp.ne.s32.totalorder %s194, %s210
      %p212 = scmp.eq.s32.totalorder %s29, 0
      %p213 = por %p211, %p212
      %p214 = scmp.le.s32.totalorder 1, %s23
      %p215 = scmp.lt.s32.totalorder %s23, 3
      %p216 = pnand %p214, %p215
      %p217 = pneg %p216
      // Predicated region
      $region9: #{one_step_mlp_pallas.1} parent=5 // pred_check
        _
      $region10: #{one_step_mlp_pallas.1} parent=5 // pred_check_branch
        %219 = sbr.rel (%p216) target = $region12
      $region11: #{one_step_mlp_pallas.1} parent=5 // pred_region
        %s220 = ssub.s32 %s23, 1
        // Predicated region
        $region13: #{one_step_mlp_pallas.1} parent=11 // pred_check
          %p221 = pneg %p96
        $region14: #{one_step_mlp_pallas.1} parent=11 // pred_check_branch
          %223 = sbr.rel (%p221) target = $region16
        $region15: #{one_step_mlp_pallas.1} parent=11 // pred_region
          %s225 = ssub.s32 192, 192
          %226 = vsyncadd [#allocation6], %s225
          %s227 = sshll.u32 [#allocation7], 4
          %s228 = int_to_ptr.vmem [resolvable:$true] %s227
          %233 = dma.hbm_to_vmem [thread:$0]  %s2, 192, %s228, [#allocation6], 64, 64, 4
        $region16: #{one_step_mlp_pallas.1} parent=11 // pred_fallthru
          _
        // Predicated region
        $region17: #{one_step_mlp_pallas.1} parent=11 // pred_check
          %p234 = pneg %p117
        $region18: #{one_step_mlp_pallas.1} parent=11 // pred_check_branch
          %236 = sbr.rel (%p234) target = $region20
        $region19: #{one_step_mlp_pallas.1} parent=11 // pred_region
          %s238 = ssub.s32 128, 128
          %239 = vsyncadd [#allocation9], %s238
          %s240 = sshll.u32 [#allocation8], 4
          %s241 = int_to_ptr.vmem [resolvable:$true] %s240
          %246 = dma.hbm_to_vmem [thread:$0]  %s3, 128, %s241, [#allocation9], 64, 64, 4
        $region20: #{one_step_mlp_pallas.1} parent=11 // pred_fallthru
          _
        // Predicated region
        $region21: #{one_step_mlp_pallas.1} parent=11 // pred_check
          %p247 = pneg %p138
        $region22: #{one_step_mlp_pallas.1} parent=11 // pred_check_branch
          %249 = sbr.rel (%p247) target = $region24
        $region23: #{one_step_mlp_pallas.1} parent=11 // pred_region
          _
        $region24: #{one_step_mlp_pallas.1} parent=11 // pred_fallthru
          _
        // Predicated region
        $region25: #{one_step_mlp_pallas.1} parent=11 // pred_check
          %p250 = pneg %p159
        $region26: #{one_step_mlp_pallas.1} parent=11 // pred_check_branch
          %252 = sbr.rel (%p250) target = $region28
        $region27: #{one_step_mlp_pallas.1} parent=11 // pred_region
          %s254 = ssub.s32 1024, 1024
          %255 = vsyncadd [#allocation9], %s254
          %s256 = sshll.u32 [#allocation10], 4
          %s257 = int_to_ptr.vmem [resolvable:$true] %s256
          %262 = dma.hbm_to_vmem [thread:$0]  %s5, 1024, %s257, [#allocation9], 64, 64, 4
        $region28: #{one_step_mlp_pallas.1} parent=11 // pred_fallthru
          _
        // Predicated region
        $region29: #{one_step_mlp_pallas.1} parent=11 // pred_check
          %p263 = pneg %p180
        $region30: #{one_step_mlp_pallas.1} parent=11 // pred_check_branch
          %265 = sbr.rel (%p263) target = $region32
        $region31: #{one_step_mlp_pallas.1} parent=11 // pred_region
          _
        $region32: #{one_step_mlp_pallas.1} parent=11 // pred_fallthru
          _
      $region12: #{one_step_mlp_pallas.1} parent=5 // pred_fallthru
        _
      %p266 = scmp.lt.s32.totalorder %s23, 2
      // Predicated region
      $region33: #{one_step_mlp_pallas.1} parent=5 // pred_check
        %p267 = pneg %p266
      $region34: #{one_step_mlp_pallas.1} parent=5 // pred_check_branch
        %269 = sbr.rel (%p267) target = $region36
      $region35: #{one_step_mlp_pallas.1} parent=5 // pred_region
        // Predicated region
        $region37: #{one_step_mlp_pallas.1} parent=35 // pred_check
          %p270 = pneg %p43
        $region38: #{one_step_mlp_pallas.1} parent=35 // pred_check_branch
          %272 = sbr.rel (%p270) target = $region40
        $region39: #{one_step_mlp_pallas.1} parent=35 // pred_region
          %s273 = sand.u32 %s33, 1
          %s274 = scalar_lea.sflag [#allocation3], %s273
          %s275 = sand.u32 %s33, 1
          %s276 = smul.addr %s275, 4
          %s277 = scalar_lea.vmem [#allocation2], %s276
          %s279 = ssub.s32 64, 64
          %280 = vsyncadd %s274, %s279
          %s281 = smul.addr %s23, 64
          %s282 = scalar_lea.hbm %s0, %s281
          %s284 = sshll.u32 %s277, 4
          %s285 = int_to_ptr.vmem [resolvable:$true] %s284
          %287 = dma.hbm_to_vmem [thread:$0]  %s282, 64, %s285, %s274
        $region40: #{one_step_mlp_pallas.1} parent=35 // pred_fallthru
          _
        // Predicated region
        $region41: #{one_step_mlp_pallas.1} parent=35 // pred_check
          %p288 = pneg %p69
        $region42: #{one_step_mlp_pallas.1} parent=35 // pred_check_branch
          %290 = sbr.rel (%p288) target = $region44
        $region43: #{one_step_mlp_pallas.1} parent=35 // pred_region
          %s291 = sand.u32 %s23, 1
          %s292 = scalar_lea.sflag [#allocation6], %s291
          %s293 = sand.u32 %s59, 1
          %s294 = smul.addr %s293, 4
          %s295 = scalar_lea.vmem [#allocation5], %s294
          %s297 = ssub.s32 64, 64
          %298 = vsyncadd %s292, %s297
          %s299 = smul.addr %s23, 64
          %s300 = scalar_lea.hbm %s1, %s299
          %s302 = sshll.u32 %s295, 4
          %s303 = int_to_ptr.vmem [resolvable:$true] %s302
          %305 = dma.hbm_to_vmem [thread:$0]  %s300, 64, %s303, %s292
        $region44: #{one_step_mlp_pallas.1} parent=35 // pred_fallthru
          _
      $region36: #{one_step_mlp_pallas.1} parent=5 // pred_fallthru
        _
      %p306 = scmp.le.s32.totalorder 1, %s23
      %p307 = scmp.lt.s32.totalorder %s23, 3
      %p308 = pnand %p306, %p307
      %p309 = pneg %p308
      // Predicated region
      $region45: #{one_step_mlp_pallas.1} parent=5 // pred_check
        _
      $region46: #{one_step_mlp_pallas.1} parent=5 // pred_check_branch
        %311 = sbr.rel (%p308) target = $region48
      $region47: #{one_step_mlp_pallas.1} parent=5 // pred_region
        %s312 = ssub.s32 %s23, 1
        %s313 = sand.u32 %s36, 1
        %s314 = scalar_lea.sflag [#allocation3], %s313
        %s315 = sand.u32 %s36, 1
        %s316 = smul.addr %s315, 4
        %s317 = scalar_lea.vmem [#allocation2], %s316
        // Predicated region
        $region49: #{one_step_mlp_pallas.1} parent=47 // pred_check
          %p318 = pneg %p49
        $region50: #{one_step_mlp_pallas.1} parent=47 // pred_check_branch
          %320 = sbr.rel (%p318) target = $region52
        $region51: #{one_step_mlp_pallas.1} parent=47 // pred_region
          %321 = dma.done %s314, 64
        $region52: #{one_step_mlp_pallas.1} parent=47 // pred_fallthru
          _
        %s322 = sand.u32 %s28, 1
        %s323 = scalar_lea.sflag [#allocation6], %s322
        %s324 = sand.u32 %s62, 1
        %s325 = smul.addr %s324, 4
        %s326 = scalar_lea.vmem [#allocation5], %s325
        // Predicated region
        $region53: #{one_step_mlp_pallas.1} parent=47 // pred_check
          %p327 = pneg %p75
        $region54: #{one_step_mlp_pallas.1} parent=47 // pred_check_branch
          %329 = sbr.rel (%p327) target = $region56
        $region55: #{one_step_mlp_pallas.1} parent=47 // pred_region
          %330 = dma.done %s323, 64
        $region56: #{one_step_mlp_pallas.1} parent=47 // pred_fallthru
          _
        // Predicated region
        $region57: #{one_step_mlp_pallas.1} parent=47 // pred_check
          %p331 = pneg %p96
        $region58: #{one_step_mlp_pallas.1} parent=47 // pred_check_branch
          %333 = sbr.rel (%p331) target = $region60
        $region59: #{one_step_mlp_pallas.1} parent=47 // pred_region
          %334 = dma.done [#allocation6], 192
        $region60: #{one_step_mlp_pallas.1} parent=47 // pred_fallthru
          _
        // Predicated region
        $region61: #{one_step_mlp_pallas.1} parent=47 // pred_check
          %p335 = pneg %p117
        $region62: #{one_step_mlp_pallas.1} parent=47 // pred_check_branch
          %337 = sbr.rel (%p335) target = $region64
        $region63: #{one_step_mlp_pallas.1} parent=47 // pred_region
          %338 = dma.done [#allocation9], 128
        $region64: #{one_step_mlp_pallas.1} parent=47 // pred_fallthru
          _
        // Predicated region
        $region65: #{one_step_mlp_pallas.1} parent=47 // pred_check
          %p339 = pneg %p159
        $region66: #{one_step_mlp_pallas.1} parent=47 // pred_check_branch
          %341 = sbr.rel (%p339) target = $region68
        $region67: #{one_step_mlp_pallas.1} parent=47 // pred_region
          %342 = dma.done [#allocation9], 1024
        $region68: #{one_step_mlp_pallas.1} parent=47 // pred_fallthru
          _
        %s343 = sand.u32 %s36, 1
        %s344 = scalar_lea.sflag [#allocation3], %s343
        %s345 = sand.u32 %s36, 1
        %s346 = smul.addr %s345, 4
        %s347 = scalar_lea.vmem [#allocation2], %s346
        %p348 = pneg %p49
        %p349 = pneg %p46
        %s350 = sand.u32 %s28, 1
        %s351 = scalar_lea.sflag [#allocation6], %s350
        %s352 = sand.u32 %s62, 1
        %s353 = smul.addr %s352, 4
        %s354 = scalar_lea.vmem [#allocation5], %s353
        %p355 = pneg %p75
        %p356 = pneg %p72
        %p357 = pneg %p96
        %p358 = pneg %p93
        %p359 = pneg %p117
        %p360 = pneg %p114
        %p361 = pneg %p138
        %p362 = pneg %p135
        %p363 = pneg %p159
        %p364 = pneg %p156
        %p365 = pneg %p180
        %p366 = pneg %p177
        %p367 = pneg %p206
        %p368 = pneg %p203
        %s369 = sand.u32 %s193, 1
        %s370 = scalar_lea.sflag [#allocation4], %s369
        %s371 = sand.u32 %s193, 1
        %s372 = smul.addr %s371, 8
        %s373 = scalar_lea.vmem [#allocation11], %s372
        %v375 = vld [vmem:[%s317] sm:$0xf]
        %v376 = vld [vmem:[#allocation7] sm:$0xf]
        %v377 = vld [vmem:[#allocation7 + $0x4] sm:$0xf]
        %v378 = vld [vmem:[#allocation7 + $0x8] sm:$0x3]
        %v379 = vld [vmem:[%s326] sm:$0xf]
        %v380 = vld [vmem:[#allocation8] sm:$0xf]
        %v381 = vld [vmem:[#allocation8 + $0x4] sm:$0xf]
        %v384 = vunpack.c.l.b16 %v380
        %v385 = vunpack.c.l.b16 %v381
        %v386 = vpack.c.b16 %v385, %v384
        %vm388 = vcmask 130048
        %v390 = vsel %vm388, %v379, 0
        %392 = vmatprep.subr.bf16.mxu0 0
        %393 = vmatpush1.bf16.msra.mxu0 0
        %394 = vmatprep.subr.bf16.mxu0 0
        %395 = vmatpush1.bf16.msra.mxu0 0
        %396 = vmatprep.subr.bf16.mxu0 0
        %397 = vmatpush1.bf16.msra.mxu0 0
        %398 = vmatprep.subr.bf16.mxu0 0
        %399 = vmatpush1.bf16.msra.mxu0 0
        %400 = vmatprep.subr.bf16.mxu0 0
        %401 = vmatpush1.bf16.msra.mxu0 0
        %402 = vmatprep.subr.bf16.mxu0 0
        %403 = vmatpush1.bf16.msra.mxu0 0
        %404 = vmatprep.subr.bf16.mxu0 0
        %405 = vmatpush1.bf16.msra.mxu0 0
        %406 = vmatprep.subr.bf16.mxu0 0
        %407 = vmatpush1.bf16.msra.mxu0 %v386
        %408 = vmatprep.subr.bf16.mxu0 0
        %409 = vmatpush2.bf16.msra.mxu0 0
        %410 = vmatprep.subr.bf16.mxu0 0
        %411 = vmatpush2.bf16.msra.mxu0 0
        %412 = vmatprep.subr.bf16.mxu0 0
        %413 = vmatpush2.bf16.msra.mxu0 0
        %414 = vmatprep.subr.bf16.mxu0 0
        %415 = vmatpush2.bf16.msra.mxu0 0
        %416 = vmatprep.subr.bf16.mxu0 0
        %417 = vmatpush2.bf16.msra.mxu0 0
        %418 = vmatprep.subr.bf16.mxu0 0
        %419 = vmatpush2.bf16.msra.mxu0 0
        %420 = vmatprep.subr.bf16.mxu0 0
        %421 = vmatpush2.bf16.msra.mxu0 0
        %422 = vmatprep.subr.bf16.mxu0 0
        %423 = vmatpush2.bf16.msra.mxu0 0
        %424 = vmatprep.mubr.bf16.mxu0 0
        %425 = vmatmul.mubr.bf16.gmra.mxu0 %v390
        %v426 = vpop.f32.mrf.mxu0
        %v427 = vadd.f32 0.0, %v426
        %v428 = vpop.f32.mrf.mxu0
        %v429 = vpop.f32.mrf.mxu0
        %v430 = vpop.f32.mrf.mxu0
        %431 = vdwg.mxu0
        %v435 = vunpack.c.l.b16 %v376
        %v436 = vunpack.c.l.b16 %v377
        %v437 = vunpack.c.l.b16 %v378
        %v438 = vpack.c.b16 %v436, %v435
        %v439 = vpack.c.b16 %v437, %v437
        %vm441 = vcmask 162816
        %v443 = vsel %vm441, %v375, 0
        %vm445 = vcmask 1041408
        %v447 = vsel %vm445, %v439, 0
        %449 = vmatprep.subr.bf16.mxu0 0
        %450 = vmatpush1.bf16.msra.mxu0 0
        %451 = vmatprep.subr.bf16.mxu0 0
        %452 = vmatpush1.bf16.msra.mxu0 0
        %453 = vmatprep.subr.bf16.mxu0 0
        %454 = vmatpush1.bf16.msra.mxu0 0
        %455 = vmatprep.subr.bf16.mxu0 0
        %456 = vmatpush1.bf16.msra.mxu0 0
        %457 = vmatprep.subr.bf16.mxu0 0
        %458 = vmatpush1.bf16.msra.mxu0 0
        %459 = vmatprep.subr.bf16.mxu0 0
        %460 = vmatpush1.bf16.msra.mxu0 0
        %461 = vmatprep.subr.bf16.mxu0 0
        %462 = vmatpush1.bf16.msra.mxu0 %v447
        %463 = vmatprep.subr.bf16.mxu0 0
        %464 = vmatpush1.bf16.msra.mxu0 %v438
        %465 = vmatprep.subr.bf16.mxu0 0
        %466 = vmatpush2.bf16.msra.mxu0 0
        %467 = vmatprep.subr.bf16.mxu0 0
        %468 = vmatpush2.bf16.msra.mxu0 0
        %469 = vmatprep.subr.bf16.mxu0 0
        %470 = vmatpush2.bf16.msra.mxu0 0
        %471 = vmatprep.subr.bf16.mxu0 0
        %472 = vmatpush2.bf16.msra.mxu0 0
        %473 = vmatprep.subr.bf16.mxu0 0
        %474 = vmatpush2.bf16.msra.mxu0 0
        %475 = vmatprep.subr.bf16.mxu0 0
        %476 = vmatpush2.bf16.msra.mxu0 0
        %477 = vmatprep.subr.bf16.mxu0 0
        %478 = vmatpush2.bf16.msra.mxu0 0
        %479 = vmatprep.subr.bf16.mxu0 0
        %480 = vmatpush2.bf16.msra.mxu0 0
        %481 = vmatprep.mubr.bf16.mxu0 0
        %482 = vmatmul.mubr.bf16.gmra.mxu0 %v443
        %v483 = vpop.f32.mrf.mxu0
        %v484 = vadd.f32 %v427, %v483
        %v485 = vpop.f32.mrf.mxu0
        %v486 = vpop.f32.mrf.mxu0
        %v487 = vpop.f32.mrf.mxu0
        %488 = vdwg.mxu0
        %v489 = vld [vmem:[%s4] sm:$0x1]
        %v491 = vlaneseq
        %v492 = vshrl.u32 %v491, 7
        %v493 = vsub.s32 0, %v492
        %v494 = vrot.slane %v489, %v493
        %v496 = vadd.f32 %v484, %v494
        %vm497 = vcmp.gt.f32.partialorder %v496, 0.0
        %v498 = vmin.f32 %v496, 0.0
        %v499 = vmul.f32 %v498, 1.442695
        %v500 = vpow.pop %v499
        %v501 = vsub.f32 %v500, 1.0
        %v502 = vsel %vm497, %v496, %v501
        %v503 = vpack.c.bf16 %v502, %v502
        %v504 = vld [vmem:[#allocation10] sm:$0xf]
        %v505 = vld [vmem:[#allocation10 + $0x4] sm:$0xf]
        %v506 = vld [vmem:[#allocation10 + $0x8] sm:$0xf]
        %v507 = vld [vmem:[#allocation10 + $0xc] sm:$0xf]
        %v508 = vld [vmem:[#allocation10 + $0x10] sm:$0xf]
        %v509 = vld [vmem:[#allocation10 + $0x14] sm:$0xf]
        %v510 = vld [vmem:[#allocation10 + $0x18] sm:$0xf]
        %v511 = vld [vmem:[#allocation10 + $0x1c] sm:$0xf]
        %v512 = vld [vmem:[#allocation10 + $0x20] sm:$0xf]
        %v513 = vld [vmem:[#allocation10 + $0x24] sm:$0xf]
        %v514 = vld [vmem:[#allocation10 + $0x28] sm:$0xf]
        %v515 = vld [vmem:[#allocation10 + $0x2c] sm:$0xf]
        %v516 = vld [vmem:[#allocation10 + $0x30] sm:$0xf]
        %v517 = vld [vmem:[#allocation10 + $0x34] sm:$0xf]
        %v518 = vld [vmem:[#allocation10 + $0x38] sm:$0xf]
        %v519 = vld [vmem:[#allocation10 + $0x3c] sm:$0xf]
        %v520 = vld [vmem:[%s6] sm:$0x1]
        %v522 = vlaneseq
        %v523 = vshrl.u32 %v522, 7
        %v524 = vsub.s32 0, %v523
        %v525 = vrot.slane %v520, %v524
        %v543 = vunpack.c.l.b16 %v504
        %v544 = vunpack.c.l.b16 %v505
        %v545 = vunpack.c.l.b16 %v506
        %v546 = vunpack.c.l.b16 %v507
        %v547 = vunpack.c.l.b16 %v508
        %v548 = vunpack.c.l.b16 %v509
        %v549 = vunpack.c.l.b16 %v510
        %v550 = vunpack.c.l.b16 %v511
        %v551 = vunpack.c.l.b16 %v512
        %v552 = vunpack.c.l.b16 %v513
        %v553 = vunpack.c.l.b16 %v514
        %v554 = vunpack.c.l.b16 %v515
        %v555 = vunpack.c.l.b16 %v516
        %v556 = vunpack.c.l.b16 %v517
        %v557 = vunpack.c.l.b16 %v518
        %v558 = vunpack.c.l.b16 %v519
        %v559 = vpack.c.b16 %v544, %v543
        %v560 = vpack.c.b16 %v546, %v545
        %v561 = vpack.c.b16 %v548, %v547
        %v562 = vpack.c.b16 %v550, %v549
        %v563 = vpack.c.b16 %v552, %v551
        %v564 = vpack.c.b16 %v554, %v553
        %v565 = vpack.c.b16 %v556, %v555
        %v566 = vpack.c.b16 %v558, %v557
        %575 = vmatprep.subr.bf16.mxu0 0
        %576 = vmatpush1.bf16.msra.mxu0 %v566
        %577 = vmatprep.subr.bf16.mxu0 0
        %578 = vmatpush1.bf16.msra.mxu0 %v565
        %579 = vmatprep.subr.bf16.mxu0 0
        %580 = vmatpush1.bf16.msra.mxu0 %v564
        %581 = vmatprep.subr.bf16.mxu0 0
        %582 = vmatpush1.bf16.msra.mxu0 %v563
        %583 = vmatprep.subr.bf16.mxu0 0
        %584 = vmatpush1.bf16.msra.mxu0 %v562
        %585 = vmatprep.subr.bf16.mxu0 0
        %586 = vmatpush1.bf16.msra.mxu0 %v561
        %587 = vmatprep.subr.bf16.mxu0 0
        %588 = vmatpush1.bf16.msra.mxu0 %v560
        %589 = vmatprep.subr.bf16.mxu0 0
        %590 = vmatpush1.bf16.msra.mxu0 %v559
        %591 = vmatprep.subr.bf16.mxu0 0
        %592 = vmatpush2.bf16.msra.mxu0 0
        %593 = vmatprep.subr.bf16.mxu0 0
        %594 = vmatpush2.bf16.msra.mxu0 0
        %595 = vmatprep.subr.bf16.mxu0 0
        %596 = vmatpush2.bf16.msra.mxu0 0
        %597 = vmatprep.subr.bf16.mxu0 0
        %598 = vmatpush2.bf16.msra.mxu0 0
        %599 = vmatprep.subr.bf16.mxu0 0
        %600 = vmatpush2.bf16.msra.mxu0 0
        %601 = vmatprep.subr.bf16.mxu0 0
        %602 = vmatpush2.bf16.msra.mxu0 0
        %603 = vmatprep.subr.bf16.mxu0 0
        %604 = vmatpush2.bf16.msra.mxu0 0
        %605 = vmatprep.subr.bf16.mxu0 0
        %606 = vmatpush2.bf16.msra.mxu0 0
        %607 = vmatprep.mubr.bf16.mxu0 0
        %608 = vmatmul.mubr.bf16.gmra.mxu0 %v503
        %v609 = vpop.f32.mrf.mxu0
        %v610 = vadd.f32 %v525, %v609
        %v611 = vpop.f32.mrf.mxu0
        %v612 = vpop.f32.mrf.mxu0
        %v613 = vpop.f32.mrf.mxu0
        %614 = vdwg.mxu0
        %615 = vst [vmem:[%s373] sm:$0xff] %v610
        %s616 = sand.u32 %s193, 1
        %s617 = scalar_lea.sflag [#allocation4], %s616
        %s618 = sand.u32 %s193, 1
        %s619 = smul.addr %s618, 8
        %s620 = scalar_lea.vmem [#allocation11], %s619
        // Predicated region
        $region69: #{one_step_mlp_pallas.1} parent=47 // pred_check
          %p621 = pneg %p203
        $region70: #{one_step_mlp_pallas.1} parent=47 // pred_check_branch
          %623 = sbr.rel (%p621) target = $region72
        $region71: #{one_step_mlp_pallas.1} parent=47 // pred_region
          %s625 = ssub.s32 128, 128
          %626 = vsyncadd %s617, %s625
          %s627 = smul.addr %s28, 128
          %s628 = scalar_lea.hbm %s7, %s627
          %s630 = sshll.u32 %s620, 4
          %s631 = int_to_ptr.vmem [resolvable:$true] %s630
          %633 = dma.vmem_to_hbm [thread:$0]  %s631, 128, %s628, %s617
        $region72: #{one_step_mlp_pallas.1} parent=47 // pred_fallthru
          _
      $region48: #{one_step_mlp_pallas.1} parent=5 // pred_fallthru
        _
      %p634 = scmp.le.s32.totalorder 2, %s23
      // Predicated region
      $region73: #{one_step_mlp_pallas.1} parent=5 // pred_check
        %p635 = pneg %p634
      $region74: #{one_step_mlp_pallas.1} parent=5 // pred_check_branch
        %637 = sbr.rel (%p635) target = $region76
      $region75: #{one_step_mlp_pallas.1} parent=5 // pred_region
        %s638 = ssub.s32 %s23, 2
        // Predicated region
        $region77: #{one_step_mlp_pallas.1} parent=75 // pred_check
          %p639 = pneg %p209
        $region78: #{one_step_mlp_pallas.1} parent=75 // pred_check_branch
          %641 = sbr.rel (%p639) target = $region80
        $region79: #{one_step_mlp_pallas.1} parent=75 // pred_region
          %s642 = sand.u32 %s194, 1
          %s643 = scalar_lea.sflag [#allocation4], %s642
          %s644 = sand.u32 %s194, 1
          %s645 = smul.addr %s644, 8
          %s646 = scalar_lea.vmem [#allocation11], %s645
          %647 = dma.done %s643, 128
        $region80: #{one_step_mlp_pallas.1} parent=75 // pred_fallthru
          _
      $region76: #{one_step_mlp_pallas.1} parent=5 // pred_fallthru
        _
    $region6: #{one_step_mlp_pallas.1} parent=1 // loop_footer
      %s27 = sadd.s32 1, %s23
    $region7: #{one_step_mlp_pallas.1} parent=1 // loop_footer_branch
      %22 = sbr.rel target = $region3
    $region8: #{one_step_mlp_pallas.1} parent=1 // loop_exit
      _
    %648 = vsyncpa [#allocation3], 1
    %s649 = scalar_lea.sflag [#allocation3], 1
    %650 = vsyncpa %s649, 1
    %651 = vsyncpa [#allocation6], 1
    %s652 = scalar_lea.sflag [#allocation6], 1
    %653 = vsyncpa %s652, 1
    %654 = vsyncpa [#allocation9], 1
    %655 = vsyncpa [#allocation4], 1
    %s656 = scalar_lea.sflag [#allocation4], 1
    %657 = vsyncpa %s656, 1

</llo_original>
